<compile_context>
chip_gen: v5e
topology: v5e:2x2
jax: 0.10.0
libtpu: 0.0.40
codegen_flags: <defaults>
</compile_context>

<pallas_src>
import math
import functools

import jax
import jax.numpy as jnp
from jax import lax
from jax.experimental import pallas as pl
from jax.experimental.pallas import tpu as pltpu


def _recurrence_kernel(*refs, dt, has_noise, tc, unroll):
    """One grid step processes `tc` timesteps of the recurrence.

    refs = (u_ref, [z_ref,] wrec_t_ref, h0_ref, hall_ref, h_scr)
      u_ref:      (tc, B, H)  precomputed x @ wi + brec, time-major chunk
      z_ref:      (tc, B, H)  pre-scaled noise chunk (only if has_noise)
      wrec_t_ref: (H, H)      wrec.T, resident across the whole sequence
      h0_ref:     (1, H)      initial hidden state
      hall_ref:   (tc, B, H)  hidden-state trajectory output chunk
      h_scr:      (B, H)      hidden state, persists across grid steps
    """
    if has_noise:
        u_ref, z_ref, wrec_t_ref, h0_ref, hall_ref, h_scr = refs
    else:
        u_ref, wrec_t_ref, h0_ref, hall_ref, h_scr = refs
        z_ref = None

    # Initialize the hidden state from h0 on the first chunk only.
    @pl.when(pl.program_id(0) == 0)
    def _():
        h_scr[...] = jnp.broadcast_to(h0_ref[...], h_scr.shape)

    wrec_t = wrec_t_ref[...]                      # resident, hoisted out of the loop
    one_minus_dt = jnp.float32(1.0 - dt)
    dt_f = jnp.float32(dt)

    def step(t, h):
        # Only the recurrent matmul lives on the serial critical path.
        pre = jnp.dot(h, wrec_t, preferred_element_type=jnp.float32) + u_ref[t]
        h_new = one_minus_dt * h + dt_f * jnp.tanh(pre)
        if has_noise:
            h_new = h_new + z_ref[t]
        hall_ref[t] = h_new                       # VMEM store; slab DMA'd out per chunk
        return h_new

    h_scr[...] = lax.fori_loop(0, tc, step, h_scr[...], unroll=unroll)


def rnn_forward(x, noise, wi, wrec, wo, brec, bwo, h0, *, dt=0.5, noise_std=0.0,
                time_chunk=128):
    """x: (B, T, I) float32, noise: (B, T, H). Returns output (B, T, O)."""
    B, T, I = x.shape
    H = wrec.shape[0]
    O = wo.shape[1]

    x = x.astype(jnp.float32)
    wi = wi.astype(jnp.float32)
    wrec = wrec.astype(jnp.float32)
    wo = wo.astype(jnp.float32)

    # --- Hoisted input projection: one dense matmul for all timesteps; the
    #     (B,T)->(T,B) layout change rides on the matmul output (no separate transpose).
    u = jnp.einsum('bti,ih->tbh', x, wi) + brec.reshape(1, 1, H)      # (T, B, H)

    has_noise = float(noise_std) != 0.0
    if has_noise:
        z = (math.sqrt(dt) * float(noise_std)) * jnp.transpose(
            noise.astype(jnp.float32), (1, 0, 2))                     # (T, B, H)

    # --- Time-chunked sequential recurrence in Pallas.
    tc = int(min(T, time_chunk))
    n_chunks = -(-T // tc)
    t_pad = n_chunks * tc
    if t_pad != T:
        u = jnp.pad(u, ((0, t_pad - T), (0, 0), (0, 0)))
        if has_noise:
            z = jnp.pad(z, ((0, t_pad - T), (0, 0), (0, 0)))

    unroll = tc <= 16   # fully unroll short chunks for LLO scheduler visibility

    kernel = functools.partial(_recurrence_kernel, dt=float(dt),
                               has_noise=has_noise, tc=tc, unroll=unroll)

    in_specs = [pl.BlockSpec((tc, B, H), lambda c: (c, 0, 0))]        # u chunk
    inputs = [u]
    if has_noise:
        in_specs.append(pl.BlockSpec((tc, B, H), lambda c: (c, 0, 0)))  # noise chunk
        inputs.append(z)
    in_specs += [
        pl.BlockSpec((H, H), lambda c: (0, 0)),                       # wrec.T (resident)
        pl.BlockSpec((1, H), lambda c: (0, 0)),                       # h0
    ]
    inputs += [wrec.T, h0.reshape(1, H).astype(jnp.float32)]

    h_all = pl.pallas_call(
        kernel,
        out_shape=jax.ShapeDtypeStruct((t_pad, B, H), jnp.float32),
        grid_spec=pltpu.PrefetchScalarGridSpec(
            num_scalar_prefetch=0,
            grid=(n_chunks,),
            in_specs=in_specs,
            out_specs=pl.BlockSpec((tc, B, H), lambda c: (c, 0, 0)),
            scratch_shapes=[pltpu.VMEM((B, H), jnp.float32)],         # persistent h
        ),
        compiler_params=pltpu.CompilerParams(
            # The recurrence is sequential: hidden state carries across grid steps
            # via the VMEM scratch, so the time-chunk axis must stay "arbitrary".
            dimension_semantics=("arbitrary",),
        ),
    )(*inputs)

    h_all = h_all[:T]   # drop time padding

    # --- Hoisted readout: one dense matmul for all timesteps; the (T,B)->(B,T)
    #     layout change rides on the matmul output.
    out = jnp.einsum('tbh,ho->bto', h_all, wo) + bwo.reshape(1, 1, O)
    return out


def rnn_reference(x, noise, wi, wrec, wo, brec, bwo, h0, *, dt=0.5, noise_std=0.0):
    """Pure-JAX reference matching the PyTorch ML_RNN=True forward."""
    B, T, _ = x.shape
    H = wrec.shape[0]
    h = jnp.broadcast_to(h0, (B, H))
    outs = []
    for i in range(T):
        rec = jnp.tanh(h @ wrec.T + x[:, i, :] @ wi + brec)
        h = (1.0 - dt) * h + dt * rec + math.sqrt(dt) * noise_std * noise[:, i, :]
        outs.append(h @ wo + bwo)
    return jnp.stack(outs, axis=1)


if __name__ == "__main__":
    # dims = [input_size, hidden_size, output_size]
    input_size, hidden_size, output_size = 4, 32, 4
    batch, seq_len = 2, 8
    dt = 0.5

    key = jax.random.PRNGKey(0)
    k_x, k_wi, k_wrec, k_wo, k_noise = jax.random.split(key, 5)

    # Deterministic parameter init matching nn.Parameter.normal_(std=1/sqrt(H))
    std = 1.0 / math.sqrt(hidden_size)
    wi = (jax.random.normal(k_wi, (input_size, hidden_size)) * std).astype(jnp.float32)
    wrec = (jax.random.normal(k_wrec, (hidden_size, hidden_size)) * std).astype(jnp.float32)
    wo = (jax.random.normal(k_wo, (hidden_size, output_size)) * std).astype(jnp.float32)
    brec = jnp.zeros((hidden_size,), jnp.float32)
    bwo = jnp.zeros((output_size,), jnp.float32)
    h0 = jnp.zeros((hidden_size,), jnp.float32)

    x = jax.random.normal(k_x, (batch, seq_len, input_size), jnp.float32)
    noise = jax.random.normal(k_noise, (batch, seq_len, hidden_size), jnp.float32)

    # Default path (noise_std=0.0): noise input / DMA / FMA are dropped at trace time.
    out = rnn_forward(x, noise, wi, wrec, wo, brec, bwo, h0, dt=dt, noise_std=0.0)
    out = jax.block_until_ready(out)
    ref = rnn_reference(x, noise, wi, wrec, wo, brec, bwo, h0, dt=dt, noise_std=0.0)
    assert out.shape == (batch, seq_len, output_size)
    assert jnp.allclose(out, ref, atol=1e-4, rtol=1e-4), \
        f"max abs err {jnp.max(jnp.abs(out - ref))}"

    # Noisy path (exercises the noise BlockSpec and in-loop add).
    out_n = rnn_forward(x, noise, wi, wrec, wo, brec, bwo, h0, dt=dt, noise_std=0.1)
    out_n = jax.block_until_ready(out_n)
    ref_n = rnn_reference(x, noise, wi, wrec, wo, brec, bwo, h0, dt=dt, noise_std=0.1)
    assert jnp.allclose(out_n, ref_n, atol=1e-4, rtol=1e-4), \
        f"max abs err {jnp.max(jnp.abs(out_n - ref_n))}"

    print("KERNEL_OK")
</pallas_src>

<mosaic_0001>
module attributes {stable_mosaic.version = 11 : i64} {
  func.func @_recurrence_kernel(%arg0: i32, %arg1: memref<8x2x32xf32, #tpu.memory_space<vmem>>, %arg2: memref<32x32xf32, #tpu.memory_space<vmem>>, %arg3: memref<1x32xf32, #tpu.memory_space<vmem>>, %arg4: memref<8x2x32xf32, #tpu.memory_space<vmem>>, %arg5: memref<2x32xf32, #tpu.memory_space<vmem>>) attributes {dimension_semantics = [#tpu.dimension_semantics<arbitrary>], iteration_bounds = array<i64: 1>, scalar_prefetch = 0 : i64, scratch_operands = 1 : i64, tpu.core_type = #tpu.core_type<tc>, window_params = [{transform_indices = @transform_0, window_bounds = array<i64: 8, 2, 32>}, {pipeline_mode = #tpu.pipeline_mode<synchronous>, transform_indices = @transform_1, window_bounds = array<i64: 32, 32>}, {pipeline_mode = #tpu.pipeline_mode<synchronous>, transform_indices = @transform_2, window_bounds = array<i64: 1, 32>}, {transform_indices = @transform_3, window_bounds = array<i64: 8, 2, 32>}]} {
    %c0_i32 = arith.constant 0 : i32
    %0 = arith.cmpi eq, %arg0, %c0_i32 : i32
    %1 = arith.extui %0 : i1 to i32
    %c0_i32_0 = arith.constant 0 : i32
    %2 = arith.cmpi ne, %1, %c0_i32_0 : i32
    scf.if %2 {
      %c0_48 = arith.constant 0 : index
      %c0_49 = arith.constant 0 : index
      %126 = vector.load %arg3[%c0_48, %c0_49] : memref<1x32xf32, #tpu.memory_space<vmem>>, vector<1x32xf32>
      %127 = vector.shape_cast %126 : vector<1x32xf32> to vector<1x32xf32>
      %128 = vector.broadcast %127 : vector<1x32xf32> to vector<2x32xf32>
      %c0_50 = arith.constant 0 : index
      %c0_51 = arith.constant 0 : index
      %129 = vector.load %arg5[%c0_50, %c0_51] : memref<2x32xf32, #tpu.memory_space<vmem>>, vector<2x32xf32>
      tpu.vector_store %arg5[%c0_50, %c0_51], %128 {strides = array<i32>} : memref<2x32xf32, #tpu.memory_space<vmem>>, vector<2x32xf32>,
    } else {
    }
    %c0 = arith.constant 0 : index
    %c0_1 = arith.constant 0 : index
    %3 = vector.load %arg2[%c0, %c0_1] : memref<32x32xf32, #tpu.memory_space<vmem>>, vector<32x32xf32>
    %c0_2 = arith.constant 0 : index
    %c0_3 = arith.constant 0 : index
    %4 = vector.load %arg5[%c0_2, %c0_3] : memref<2x32xf32, #tpu.memory_space<vmem>>, vector<2x32xf32>
    %cst = arith.constant 5.000000e-01 : f32
    %cst_4 = arith.constant 5.000000e-01 : f32
    %c0_i32_5 = arith.constant 0 : i32
    %cst_6 = arith.constant dense<0.000000e+00> : vector<2x32xf32>
    %5 = tpu.matmul %4, %3, %cst_6 {dimension_numbers = #tpu.dot_dimension_numbers<[1], [0], [0], [1], [0, 0, 1, 1], [], []>} : vector<2x32xf32>, vector<32x32xf32>, vector<2x32xf32> -> vector<2x32xf32>
    %6 = arith.index_cast %c0_i32_5 : i32 to index
    %c0_7 = arith.constant 0 : index
    %c0_8 = arith.constant 0 : index
    %7 = vector.load %arg1[%6, %c0_7, %c0_8] : memref<8x2x32xf32, #tpu.memory_space<vmem>>, vector<1x2x32xf32>
    %8 = vector.shape_cast %7 : vector<1x2x32xf32> to vector<2x32xf32>
    %9 = arith.addf %5, %8 : vector<2x32xf32>
    %10 = vector.broadcast %cst : f32 to vector<2x32xf32>
    %11 = arith.mulf %10, %4 : vector<2x32xf32>
    %12 = math.tanh %9 : vector<2x32xf32>
    %13 = vector.broadcast %cst_4 : f32 to vector<2x32xf32>
    %14 = arith.mulf %13, %12 : vector<2x32xf32>
    %15 = arith.addf %11, %14 : vector<2x32xf32>
    %16 = arith.index_cast %c0_i32_5 : i32 to index
    %c0_9 = arith.constant 0 : index
    %c0_10 = arith.constant 0 : index
    %17 = vector.load %arg4[%16, %c0_9, %c0_10] : memref<8x2x32xf32, #tpu.memory_space<vmem>>, vector<1x2x32xf32>
    %18 = vector.shape_cast %17 : vector<1x2x32xf32> to vector<2x32xf32>
    %19 = vector.shape_cast %15 : vector<2x32xf32> to vector<1x2x32xf32>
    tpu.vector_store %arg4[%16, %c0_9, %c0_10], %19 {strides = array<i32>} : memref<8x2x32xf32, #tpu.memory_space<vmem>>, vector<1x2x32xf32>,
    %c1_i32 = arith.constant 1 : i32
    %cst_11 = arith.constant dense<0.000000e+00> : vector<2x32xf32>
    %20 = tpu.matmul %15, %3, %cst_11 {dimension_numbers = #tpu.dot_dimension_numbers<[1], [0], [0], [1], [0, 0, 1, 1], [], []>} : vector<2x32xf32>, vector<32x32xf32>, vector<2x32xf32> -> vector<2x32xf32>
    %21 = arith.index_cast %c1_i32 : i32 to index
    %c0_12 = arith.constant 0 : index
    %c0_13 = arith.constant 0 : index
    %22 = vector.load %arg1[%21, %c0_12, %c0_13] : memref<8x2x32xf32, #tpu.memory_space<vmem>>, vector<1x2x32xf32>
    %23 = vector.shape_cast %22 : vector<1x2x32xf32> to vector<2x32xf32>
    %24 = arith.addf %20, %23 : vector<2x32xf32>
    %25 = vector.broadcast %cst : f32 to vector<2x32xf32>
    %26 = arith.mulf %25, %15 : vector<2x32xf32>
    %27 = math.tanh %24 : vector<2x32xf32>
    %28 = vector.broadcast %cst_4 : f32 to vector<2x32xf32>
    %29 = arith.mulf %28, %27 : vector<2x32xf32>
    %30 = arith.addf %26, %29 : vector<2x32xf32>
    %31 = arith.index_cast %c1_i32 : i32 to index
    %c0_14 = arith.constant 0 : index
    %c0_15 = arith.constant 0 : index
    %32 = vector.load %arg4[%31, %c0_14, %c0_15] : memref<8x2x32xf32, #tpu.memory_space<vmem>>, vector<1x2x32xf32>
    %33 = vector.shape_cast %32 : vector<1x2x32xf32> to vector<2x32xf32>
    %34 = vector.shape_cast %30 : vector<2x32xf32> to vector<1x2x32xf32>
    tpu.vector_store %arg4[%31, %c0_14, %c0_15], %34 {strides = array<i32>} : memref<8x2x32xf32, #tpu.memory_space<vmem>>, vector<1x2x32xf32>,
    %c2_i32 = arith.constant 2 : i32
    %cst_16 = arith.constant dense<0.000000e+00> : vector<2x32xf32>
    %35 = tpu.matmul %30, %3, %cst_16 {dimension_numbers = #tpu.dot_dimension_numbers<[1], [0], [0], [1], [0, 0, 1, 1], [], []>} : vector<2x32xf32>, vector<32x32xf32>, vector<2x32xf32> -> vector<2x32xf32>
    %36 = arith.index_cast %c2_i32 : i32 to index
    %c0_17 = arith.constant 0 : index
    %c0_18 = arith.constant 0 : index
    %37 = vector.load %arg1[%36, %c0_17, %c0_18] : memref<8x2x32xf32, #tpu.memory_space<vmem>>, vector<1x2x32xf32>
    %38 = vector.shape_cast %37 : vector<1x2x32xf32> to vector<2x32xf32>
    %39 = arith.addf %35, %38 : vector<2x32xf32>
    %40 = vector.broadcast %cst : f32 to vector<2x32xf32>
    %41 = arith.mulf %40, %30 : vector<2x32xf32>
    %42 = math.tanh %39 : vector<2x32xf32>
    %43 = vector.broadcast %cst_4 : f32 to vector<2x32xf32>
    %44 = arith.mulf %43, %42 : vector<2x32xf32>
    %45 = arith.addf %41, %44 : vector<2x32xf32>
    %46 = arith.index_cast %c2_i32 : i32 to index
    %c0_19 = arith.constant 0 : index
    %c0_20 = arith.constant 0 : index
    %47 = vector.load %arg4[%46, %c0_19, %c0_20] : memref<8x2x32xf32, #tpu.memory_space<vmem>>, vector<1x2x32xf32>
    %48 = vector.shape_cast %47 : vector<1x2x32xf32> to vector<2x32xf32>
    %49 = vector.shape_cast %45 : vector<2x32xf32> to vector<1x2x32xf32>
    tpu.vector_store %arg4[%46, %c0_19, %c0_20], %49 {strides = array<i32>} : memref<8x2x32xf32, #tpu.memory_space<vmem>>, vector<1x2x32xf32>,
    %c3_i32 = arith.constant 3 : i32
    %cst_21 = arith.constant dense<0.000000e+00> : vector<2x32xf32>
    %50 = tpu.matmul %45, %3, %cst_21 {dimension_numbers = #tpu.dot_dimension_numbers<[1], [0], [0], [1], [0, 0, 1, 1], [], []>} : vector<2x32xf32>, vector<32x32xf32>, vector<2x32xf32> -> vector<2x32xf32>
    %51 = arith.index_cast %c3_i32 : i32 to index
    %c0_22 = arith.constant 0 : index
    %c0_23 = arith.constant 0 : index
    %52 = vector.load %arg1[%51, %c0_22, %c0_23] : memref<8x2x32xf32, #tpu.memory_space<vmem>>, vector<1x2x32xf32>
    %53 = vector.shape_cast %52 : vector<1x2x32xf32> to vector<2x32xf32>
    %54 = arith.addf %50, %53 : vector<2x32xf32>
    %55 = vector.broadcast %cst : f32 to vector<2x32xf32>
    %56 = arith.mulf %55, %45 : vector<2x32xf32>
    %57 = math.tanh %54 : vector<2x32xf32>
    %58 = vector.broadcast %cst_4 : f32 to vector<2x32xf32>
    %59 = arith.mulf %58, %57 : vector<2x32xf32>
    %60 = arith.addf %56, %59 : vector<2x32xf32>
    %61 = arith.index_cast %c3_i32 : i32 to index
    %c0_24 = arith.constant 0 : index
    %c0_25 = arith.constant 0 : index
    %62 = vector.load %arg4[%61, %c0_24, %c0_25] : memref<8x2x32xf32, #tpu.memory_space<vmem>>, vector<1x2x32xf32>
    %63 = vector.shape_cast %62 : vector<1x2x32xf32> to vector<2x32xf32>
    %64 = vector.shape_cast %60 : vector<2x32xf32> to vector<1x2x32xf32>
    tpu.vector_store %arg4[%61, %c0_24, %c0_25], %64 {strides = array<i32>} : memref<8x2x32xf32, #tpu.memory_space<vmem>>, vector<1x2x32xf32>,
    %c4_i32 = arith.constant 4 : i32
    %cst_26 = arith.constant dense<0.000000e+00> : vector<2x32xf32>
    %65 = tpu.matmul %60, %3, %cst_26 {dimension_numbers = #tpu.dot_dimension_numbers<[1], [0], [0], [1], [0, 0, 1, 1], [], []>} : vector<2x32xf32>, vector<32x32xf32>, vector<2x32xf32> -> vector<2x32xf32>
    %66 = arith.index_cast %c4_i32 : i32 to index
    %c0_27 = arith.constant 0 : index
    %c0_28 = arith.constant 0 : index
    %67 = vector.load %arg1[%66, %c0_27, %c0_28] : memref<8x2x32xf32, #tpu.memory_space<vmem>>, vector<1x2x32xf32>
    %68 = vector.shape_cast %67 : vector<1x2x32xf32> to vector<2x32xf32>
    %69 = arith.addf %65, %68 : vector<2x32xf32>
    %70 = vector.broadcast %cst : f32 to vector<2x32xf32>
    %71 = arith.mulf %70, %60 : vector<2x32xf32>
    %72 = math.tanh %69 : vector<2x32xf32>
    %73 = vector.broadcast %cst_4 : f32 to vector<2x32xf32>
    %74 = arith.mulf %73, %72 : vector<2x32xf32>
    %75 = arith.addf %71, %74 : vector<2x32xf32>
    %76 = arith.index_cast %c4_i32 : i32 to index
    %c0_29 = arith.constant 0 : index
    %c0_30 = arith.constant 0 : index
    %77 = vector.load %arg4[%76, %c0_29, %c0_30] : memref<8x2x32xf32, #tpu.memory_space<vmem>>, vector<1x2x32xf32>
    %78 = vector.shape_cast %77 : vector<1x2x32xf32> to vector<2x32xf32>
    %79 = vector.shape_cast %75 : vector<2x32xf32> to vector<1x2x32xf32>
    tpu.vector_store %arg4[%76, %c0_29, %c0_30], %79 {strides = array<i32>} : memref<8x2x32xf32, #tpu.memory_space<vmem>>, vector<1x2x32xf32>,
    %c5_i32 = arith.constant 5 : i32
    %cst_31 = arith.constant dense<0.000000e+00> : vector<2x32xf32>
    %80 = tpu.matmul %75, %3, %cst_31 {dimension_numbers = #tpu.dot_dimension_numbers<[1], [0], [0], [1], [0, 0, 1, 1], [], []>} : vector<2x32xf32>, vector<32x32xf32>, vector<2x32xf32> -> vector<2x32xf32>
    %81 = arith.index_cast %c5_i32 : i32 to index
    %c0_32 = arith.constant 0 : index
    %c0_33 = arith.constant 0 : index
    %82 = vector.load %arg1[%81, %c0_32, %c0_33] : memref<8x2x32xf32, #tpu.memory_space<vmem>>, vector<1x2x32xf32>
    %83 = vector.shape_cast %82 : vector<1x2x32xf32> to vector<2x32xf32>
    %84 = arith.addf %80, %83 : vector<2x32xf32>
    %85 = vector.broadcast %cst : f32 to vector<2x32xf32>
    %86 = arith.mulf %85, %75 : vector<2x32xf32>
    %87 = math.tanh %84 : vector<2x32xf32>
    %88 = vector.broadcast %cst_4 : f32 to vector<2x32xf32>
    %89 = arith.mulf %88, %87 : vector<2x32xf32>
    %90 = arith.addf %86, %89 : vector<2x32xf32>
    %91 = arith.index_cast %c5_i32 : i32 to index
    %c0_34 = arith.constant 0 : index
    %c0_35 = arith.constant 0 : index
    %92 = vector.load %arg4[%91, %c0_34, %c0_35] : memref<8x2x32xf32, #tpu.memory_space<vmem>>, vector<1x2x32xf32>
    %93 = vector.shape_cast %92 : vector<1x2x32xf32> to vector<2x32xf32>
    %94 = vector.shape_cast %90 : vector<2x32xf32> to vector<1x2x32xf32>
    tpu.vector_store %arg4[%91, %c0_34, %c0_35], %94 {strides = array<i32>} : memref<8x2x32xf32, #tpu.memory_space<vmem>>, vector<1x2x32xf32>,
    %c6_i32 = arith.constant 6 : i32
    %cst_36 = arith.constant dense<0.000000e+00> : vector<2x32xf32>
    %95 = tpu.matmul %90, %3, %cst_36 {dimension_numbers = #tpu.dot_dimension_numbers<[1], [0], [0], [1], [0, 0, 1, 1], [], []>} : vector<2x32xf32>, vector<32x32xf32>, vector<2x32xf32> -> vector<2x32xf32>
    %96 = arith.index_cast %c6_i32 : i32 to index
    %c0_37 = arith.constant 0 : index
    %c0_38 = arith.constant 0 : index
    %97 = vector.load %arg1[%96, %c0_37, %c0_38] : memref<8x2x32xf32, #tpu.memory_space<vmem>>, vector<1x2x32xf32>
    %98 = vector.shape_cast %97 : vector<1x2x32xf32> to vector<2x32xf32>
    %99 = arith.addf %95, %98 : vector<2x32xf32>
    %100 = vector.broadcast %cst : f32 to vector<2x32xf32>
    %101 = arith.mulf %100, %90 : vector<2x32xf32>
    %102 = math.tanh %99 : vector<2x32xf32>
    %103 = vector.broadcast %cst_4 : f32 to vector<2x32xf32>
    %104 = arith.mulf %103, %102 : vector<2x32xf32>
    %105 = arith.addf %101, %104 : vector<2x32xf32>
    %106 = arith.index_cast %c6_i32 : i32 to index
    %c0_39 = arith.constant 0 : index
    %c0_40 = arith.constant 0 : index
    %107 = vector.load %arg4[%106, %c0_39, %c0_40] : memref<8x2x32xf32, #tpu.memory_space<vmem>>, vector<1x2x32xf32>
    %108 = vector.shape_cast %107 : vector<1x2x32xf32> to vector<2x32xf32>
    %109 = vector.shape_cast %105 : vector<2x32xf32> to vector<1x2x32xf32>
    tpu.vector_store %arg4[%106, %c0_39, %c0_40], %109 {strides = array<i32>} : memref<8x2x32xf32, #tpu.memory_space<vmem>>, vector<1x2x32xf32>,
    %c7_i32 = arith.constant 7 : i32
    %cst_41 = arith.constant dense<0.000000e+00> : vector<2x32xf32>
    %110 = tpu.matmul %105, %3, %cst_41 {dimension_numbers = #tpu.dot_dimension_numbers<[1], [0], [0], [1], [0, 0, 1, 1], [], []>} : vector<2x32xf32>, vector<32x32xf32>, vector<2x32xf32> -> vector<2x32xf32>
    %111 = arith.index_cast %c7_i32 : i32 to index
    %c0_42 = arith.constant 0 : index
    %c0_43 = arith.constant 0 : index
    %112 = vector.load %arg1[%111, %c0_42, %c0_43] : memref<8x2x32xf32, #tpu.memory_space<vmem>>, vector<1x2x32xf32>
    %113 = vector.shape_cast %112 : vector<1x2x32xf32> to vector<2x32xf32>
    %114 = arith.addf %110, %113 : vector<2x32xf32>
    %115 = vector.broadcast %cst : f32 to vector<2x32xf32>
    %116 = arith.mulf %115, %105 : vector<2x32xf32>
    %117 = math.tanh %114 : vector<2x32xf32>
    %118 = vector.broadcast %cst_4 : f32 to vector<2x32xf32>
    %119 = arith.mulf %118, %117 : vector<2x32xf32>
    %120 = arith.addf %116, %119 : vector<2x32xf32>
    %121 = arith.index_cast %c7_i32 : i32 to index
    %c0_44 = arith.constant 0 : index
    %c0_45 = arith.constant 0 : index
    %122 = vector.load %arg4[%121, %c0_44, %c0_45] : memref<8x2x32xf32, #tpu.memory_space<vmem>>, vector<1x2x32xf32>
    %123 = vector.shape_cast %122 : vector<1x2x32xf32> to vector<2x32xf32>
    %124 = vector.shape_cast %120 : vector<2x32xf32> to vector<1x2x32xf32>
    tpu.vector_store %arg4[%121, %c0_44, %c0_45], %124 {strides = array<i32>} : memref<8x2x32xf32, #tpu.memory_space<vmem>>, vector<1x2x32xf32>,
    %c8_i32 = arith.constant 8 : i32
    %c0_46 = arith.constant 0 : index
    %c0_47 = arith.constant 0 : index
    %125 = vector.load %arg5[%c0_46, %c0_47] : memref<2x32xf32, #tpu.memory_space<vmem>>, vector<2x32xf32>
    tpu.vector_store %arg5[%c0_46, %c0_47], %120 {strides = array<i32>} : memref<2x32xf32, #tpu.memory_space<vmem>>, vector<2x32xf32>,
    return
  }
  func.func @transform_0(%arg0: i32) -> (i32, i32, i32) {
    %c0_i32 = arith.constant 0 : i32
    %c0_i32_0 = arith.constant 0 : i32
    %c0_i32_1 = arith.constant 0 : i32
    return %arg0, %c0_i32, %c0_i32_0 : i32, i32, i32
  }
  func.func @transform_1(%arg0: i32) -> (i32, i32) {
    %c0_i32 = arith.constant 0 : i32
    %c0_i32_0 = arith.constant 0 : i32
    %c0_i32_1 = arith.constant 0 : i32
    return %c0_i32, %c0_i32_0 : i32, i32
  }
  func.func @transform_2(%arg0: i32) -> (i32, i32) {
    %c0_i32 = arith.constant 0 : i32
    %c0_i32_0 = arith.constant 0 : i32
    %c0_i32_1 = arith.constant 0 : i32
    return %c0_i32, %c0_i32_0 : i32, i32
  }
  func.func @transform_3(%arg0: i32) -> (i32, i32, i32) {
    %c0_i32 = arith.constant 0 : i32
    %c0_i32_0 = arith.constant 0 : i32
    %c0_i32_1 = arith.constant 0 : i32
    return %arg0, %c0_i32, %c0_i32_0 : i32, i32, i32
  }
}

</mosaic_0001>

<llo_original>
// kernel: tpu_custom_call.1
$region0: #{tpu_custom_call.1}
  #allocation0 [shape = 'u32[]', space=smem, size = 0x4, offset = 0x4, fixed_abs, tag = 'smem constant byte address 0x4 - core index']
  #allocation1 [shape = 'u32[72,128]{1,0:T(1,128)}', space=vmem, size = 0x9000, scoped, tag = 'internal scratch']
  #allocation2 [shape = 'f32[2,32]{1,0:T(2,128)}', space=vmem, size = 0x400, scoped, tag = 'scratch operand']
  %s0 = inlined_call_operand.hbm [shape: f32[8,2,32], index: 0, kind: input, shape index: {}]
  %s1 = inlined_call_operand.hbm [shape: f32[32,32], index: 1, kind: input, shape index: {}]
  %s2 = inlined_call_operand.vmem [shape: f32[1,32], index: 2, kind: input, shape index: {}]
  %s3 = inlined_call_operand.hbm [shape: f32[8,2,32], index: 3, kind: output, shape index: {}]
  %s4 = sld [smem:[#allocation0]]
  $region34: #{tpu_custom_call.1} parent=0
    _
  %s6 = ssub.s32 1, %s4
  %s7 = scalar_select 0, %s6, %s4
  $region1: #{tpu_custom_call.1} parent=0
    #allocation3 [shape = 'u8[8192]{0}', space=vmem, size = 0x2000, scoped, tag = 'input window, operand 0, single buffered']
    #allocation4 [shape = 's32[1]{0}', space=sflag, size = 0x4, scoped, tag = 'scoped memory for tpu_custom_call.1']
    #allocation5 [shape = 's32[1]{0}', space=sflag, size = 0x4, scoped, tag = 'scoped memory for tpu_custom_call.1']
    #allocation6 [shape = 'u8[16384]{0}', space=vmem, size = 0x4000, scoped, tag = 'input window, operand 1, single buffered']
    #allocation7 [shape = 's32[1]{0}', space=sflag, size = 0x4, scoped, tag = 'scoped memory for tpu_custom_call.1']
    #allocation8 [shape = 'u8[8192]{0}', space=vmem, size = 0x2000, scoped, tag = 'output window, operand 0, single buffered']
    %8 = vsyncpa [#allocation4], 0
    %9 = vsyncpa [#allocation7], 0
    %10 = vsyncpa [#allocation5], 0
    // Predicated region
    $region2: #{tpu_custom_call.1} parent=1 // pred_check
      _
    $region3: #{tpu_custom_call.1} parent=1 // pred_check_branch
      %12 = sbr.rel (0) target = $region5
    $region4: #{tpu_custom_call.1} parent=1 // pred_region
      %14 = vsyncadd [#allocation4], 0
      %s15 = sshll.u32 %s0, 4
      %s16 = int_to_ptr.hbm [resolvable:$true] %s15
      %s17 = sshll.u32 [#allocation3], 4
      %s18 = int_to_ptr.vmem [resolvable:$true] %s17
      %23 = dma.hbm_to_vmem [thread:$0]  %s16, 256, %s18, [#allocation4], 32, 32, 2
    $region5: #{tpu_custom_call.1} parent=1 // pred_fallthru
      _
    // Predicated region
    $region6: #{tpu_custom_call.1} parent=1 // pred_check
      _
    $region7: #{tpu_custom_call.1} parent=1 // pred_check_branch
      %25 = sbr.rel (0) target = $region9
    $region8: #{tpu_custom_call.1} parent=1 // pred_region
      %27 = vsyncadd [#allocation7], 0
      %s28 = sshll.u32 %s1, 4
      %s29 = int_to_ptr.hbm [resolvable:$true] %s28
      %s30 = sshll.u32 [#allocation6], 4
      %s31 = int_to_ptr.vmem [resolvable:$true] %s30
      %36 = dma.hbm_to_vmem [thread:$0]  %s29, 512, %s31, [#allocation7], 128, 128, 8
    $region9: #{tpu_custom_call.1} parent=1 // pred_fallthru
      _
    // Predicated region
    $region10: #{tpu_custom_call.1} parent=1 // pred_check
      _
    $region11: #{tpu_custom_call.1} parent=1 // pred_check_branch
      %38 = sbr.rel (0) target = $region13
    $region12: #{tpu_custom_call.1} parent=1 // pred_region
      _
    $region13: #{tpu_custom_call.1} parent=1 // pred_fallthru
      _
    // Predicated region
    $region14: #{tpu_custom_call.1} parent=1 // pred_check
      _
    $region15: #{tpu_custom_call.1} parent=1 // pred_check_branch
      %40 = sbr.rel (0) target = $region17
    $region16: #{tpu_custom_call.1} parent=1 // pred_region
      %42 = dma.done [#allocation4], 256
    $region17: #{tpu_custom_call.1} parent=1 // pred_fallthru
      _
    // Predicated region
    $region18: #{tpu_custom_call.1} parent=1 // pred_check
      _
    $region19: #{tpu_custom_call.1} parent=1 // pred_check_branch
      %44 = sbr.rel (0) target = $region21
    $region20: #{tpu_custom_call.1} parent=1 // pred_region
      %46 = dma.done [#allocation7], 512
    $region21: #{tpu_custom_call.1} parent=1 // pred_fallthru
      _
    %p47 = scmp.eq.s32.totalorder 0, 0
    // Predicated region
    $region22: #{tpu_custom_call.1} parent=1 // pred_check
      %p48 = pneg %p47
    $region23: #{tpu_custom_call.1} parent=1 // pred_check_branch
      %50 = sbr.rel (%p48) target = $region25
    $region24: #{tpu_custom_call.1} parent=1 // pred_region
      %v51 = vld [vmem:[%s2] sm:$0x1]
      %v53 = vperm.slane %v51, 0
      %vm55 = vcmask 254976
      %56 = vst.msk [vmem:[#allocation2] sm:$0x3] %vm55, %v53
    $region25: #{tpu_custom_call.1} parent=1 // pred_fallthru
      _
    %v57 = vld [vmem:[#allocation6] sm:$0xff]
    %v58 = vld [vmem:[#allocation6 + $0x8] sm:$0xff]
    %v59 = vld [vmem:[#allocation6 + $0x10] sm:$0xff]
    %v60 = vld [vmem:[#allocation6 + $0x18] sm:$0xff]
    %v61 = vld [vmem:[#allocation2] sm:$0x3]
    %v62 = vld [vmem:[#allocation3] sm:$0x3]
    %vm63 = vcmask 261120
    %v65 = vsel %vm63, %v61, 0
    %67 = vmatpush.msra.mxu0 0.0
    %68 = vmatpush.msra.mxu0 0.0
    %69 = vmatpush.msra.mxu0 0.0
    %70 = vmatpush.msra.mxu0 0.0
    %71 = vmatpush.msra.mxu0 0.0
    %72 = vmatpush.msra.mxu0 0.0
    %73 = vmatpush.msra.mxu0 0.0
    %74 = vmatpush.msra.mxu0 0.0
    %75 = vmatpush.msra.mxu0 0.0
    %76 = vmatpush.msra.mxu0 0.0
    %77 = vmatpush.msra.mxu0 0.0
    %78 = vmatpush.msra.mxu0 0.0
    %79 = vmatpush.msra.mxu0 %v60
    %80 = vmatpush.msra.mxu0 %v59
    %81 = vmatpush.msra.mxu0 %v58
    %82 = vmatpush.msra.mxu0 %v57
    %83 = vmatmul.f32.gmra.mxu0 %v65
    %v84 = vpop.f32.mrf.mxu0
    %v85 = vadd.f32 %v62, %v84
    %86 = vdwg.mxu0
    %v87 = vmul.f32 %v61, 0.5
    %v88 = vtanh.pop %v85
    %v89 = vmul.f32 %v88, 0.5
    %v90 = vadd.f32 %v87, %v89
    %vm91 = vcmask 254976
    %92 = vst.msk [vmem:[#allocation8] sm:$0x3] %vm91, %v90
    %s93 = scalar_lea.vmem [#allocation3], 2
    %v94 = vld [vmem:[%s93] sm:$0x3]
    %v96 = vsel %vm63, %v90, 0
    %98 = vmatpush.msra.mxu0 0.0
    %99 = vmatpush.msra.mxu0 0.0
    %100 = vmatpush.msra.mxu0 0.0
    %101 = vmatpush.msra.mxu0 0.0
    %102 = vmatpush.msra.mxu0 0.0
    %103 = vmatpush.msra.mxu0 0.0
    %104 = vmatpush.msra.mxu0 0.0
    %105 = vmatpush.msra.mxu0 0.0
    %106 = vmatpush.msra.mxu0 0.0
    %107 = vmatpush.msra.mxu0 0.0
    %108 = vmatpush.msra.mxu0 0.0
    %109 = vmatpush.msra.mxu0 0.0
    %110 = vmatpush.msra.mxu0 %v60
    %111 = vmatpush.msra.mxu0 %v59
    %112 = vmatpush.msra.mxu0 %v58
    %113 = vmatpush.msra.mxu0 %v57
    %114 = vmatmul.f32.gmra.mxu0 %v96
    %v115 = vpop.f32.mrf.mxu0
    %v116 = vadd.f32 %v94, %v115
    %117 = vdwg.mxu0
    %v118 = vmul.f32 %v90, 0.5
    %v119 = vtanh.pop %v116
    %v120 = vmul.f32 %v119, 0.5
    %v121 = vadd.f32 %v118, %v120
    %s122 = scalar_lea.vmem [#allocation8], 2
    %123 = vst.msk [vmem:[%s122] sm:$0x3] %vm91, %v121
    %s124 = scalar_lea.vmem [#allocation3], 4
    %v125 = vld [vmem:[%s124] sm:$0x3]
    %v127 = vsel %vm63, %v121, 0
    %129 = vmatpush.msra.mxu0 0.0
    %130 = vmatpush.msra.mxu0 0.0
    %131 = vmatpush.msra.mxu0 0.0
    %132 = vmatpush.msra.mxu0 0.0
    %133 = vmatpush.msra.mxu0 0.0
    %134 = vmatpush.msra.mxu0 0.0
    %135 = vmatpush.msra.mxu0 0.0
    %136 = vmatpush.msra.mxu0 0.0
    %137 = vmatpush.msra.mxu0 0.0
    %138 = vmatpush.msra.mxu0 0.0
    %139 = vmatpush.msra.mxu0 0.0
    %140 = vmatpush.msra.mxu0 0.0
    %141 = vmatpush.msra.mxu0 %v60
    %142 = vmatpush.msra.mxu0 %v59
    %143 = vmatpush.msra.mxu0 %v58
    %144 = vmatpush.msra.mxu0 %v57
    %145 = vmatmul.f32.gmra.mxu0 %v127
    %v146 = vpop.f32.mrf.mxu0
    %v147 = vadd.f32 %v125, %v146
    %148 = vdwg.mxu0
    %v149 = vmul.f32 %v121, 0.5
    %v150 = vtanh.pop %v147
    %v151 = vmul.f32 %v150, 0.5
    %v152 = vadd.f32 %v149, %v151
    %s153 = scalar_lea.vmem [#allocation8], 4
    %154 = vst.msk [vmem:[%s153] sm:$0x3] %vm91, %v152
    %s155 = scalar_lea.vmem [#allocation3], 6
    %v156 = vld [vmem:[%s155] sm:$0x3]
    %v158 = vsel %vm63, %v152, 0
    %160 = vmatpush.msra.mxu0 0.0
    %161 = vmatpush.msra.mxu0 0.0
    %162 = vmatpush.msra.mxu0 0.0
    %163 = vmatpush.msra.mxu0 0.0
    %164 = vmatpush.msra.mxu0 0.0
    %165 = vmatpush.msra.mxu0 0.0
    %166 = vmatpush.msra.mxu0 0.0
    %167 = vmatpush.msra.mxu0 0.0
    %168 = vmatpush.msra.mxu0 0.0
    %169 = vmatpush.msra.mxu0 0.0
    %170 = vmatpush.msra.mxu0 0.0
    %171 = vmatpush.msra.mxu0 0.0
    %172 = vmatpush.msra.mxu0 %v60
    %173 = vmatpush.msra.mxu0 %v59
    %174 = vmatpush.msra.mxu0 %v58
    %175 = vmatpush.msra.mxu0 %v57
    %176 = vmatmul.f32.gmra.mxu0 %v158
    %v177 = vpop.f32.mrf.mxu0
    %v178 = vadd.f32 %v156, %v177
    %179 = vdwg.mxu0
    %v180 = vmul.f32 %v152, 0.5
    %v181 = vtanh.pop %v178
    %v182 = vmul.f32 %v181, 0.5
    %v183 = vadd.f32 %v180, %v182
    %s184 = scalar_lea.vmem [#allocation8], 6
    %185 = vst.msk [vmem:[%s184] sm:$0x3] %vm91, %v183
    %s186 = scalar_lea.vmem [#allocation3], 8
    %v187 = vld [vmem:[%s186] sm:$0x3]
    %v189 = vsel %vm63, %v183, 0
    %191 = vmatpush.msra.mxu0 0.0
    %192 = vmatpush.msra.mxu0 0.0
    %193 = vmatpush.msra.mxu0 0.0
    %194 = vmatpush.msra.mxu0 0.0
    %195 = vmatpush.msra.mxu0 0.0
    %196 = vmatpush.msra.mxu0 0.0
    %197 = vmatpush.msra.mxu0 0.0
    %198 = vmatpush.msra.mxu0 0.0
    %199 = vmatpush.msra.mxu0 0.0
    %200 = vmatpush.msra.mxu0 0.0
    %201 = vmatpush.msra.mxu0 0.0
    %202 = vmatpush.msra.mxu0 0.0
    %203 = vmatpush.msra.mxu0 %v60
    %204 = vmatpush.msra.mxu0 %v59
    %205 = vmatpush.msra.mxu0 %v58
    %206 = vmatpush.msra.mxu0 %v57
    %207 = vmatmul.f32.gmra.mxu0 %v189
    %v208 = vpop.f32.mrf.mxu0
    %v209 = vadd.f32 %v187, %v208
    %210 = vdwg.mxu0
    %v211 = vmul.f32 %v183, 0.5
    %v212 = vtanh.pop %v209
    %v213 = vmul.f32 %v212, 0.5
    %v214 = vadd.f32 %v211, %v213
    %s215 = scalar_lea.vmem [#allocation8], 8
    %216 = vst.msk [vmem:[%s215] sm:$0x3] %vm91, %v214
    %s217 = scalar_lea.vmem [#allocation3], 10
    %v218 = vld [vmem:[%s217] sm:$0x3]
    %v220 = vsel %vm63, %v214, 0
    %222 = vmatpush.msra.mxu0 0.0
    %223 = vmatpush.msra.mxu0 0.0
    %224 = vmatpush.msra.mxu0 0.0
    %225 = vmatpush.msra.mxu0 0.0
    %226 = vmatpush.msra.mxu0 0.0
    %227 = vmatpush.msra.mxu0 0.0
    %228 = vmatpush.msra.mxu0 0.0
    %229 = vmatpush.msra.mxu0 0.0
    %230 = vmatpush.msra.mxu0 0.0
    %231 = vmatpush.msra.mxu0 0.0
    %232 = vmatpush.msra.mxu0 0.0
    %233 = vmatpush.msra.mxu0 0.0
    %234 = vmatpush.msra.mxu0 %v60
    %235 = vmatpush.msra.mxu0 %v59
    %236 = vmatpush.msra.mxu0 %v58
    %237 = vmatpush.msra.mxu0 %v57
    %238 = vmatmul.f32.gmra.mxu0 %v220
    %v239 = vpop.f32.mrf.mxu0
    %v240 = vadd.f32 %v218, %v239
    %241 = vdwg.mxu0
    %v242 = vmul.f32 %v214, 0.5
    %v243 = vtanh.pop %v240
    %v244 = vmul.f32 %v243, 0.5
    %v245 = vadd.f32 %v242, %v244
    %s246 = scalar_lea.vmem [#allocation8], 10
    %247 = vst.msk [vmem:[%s246] sm:$0x3] %vm91, %v245
    %s248 = scalar_lea.vmem [#allocation3], 12
    %v249 = vld [vmem:[%s248] sm:$0x3]
    %v251 = vsel %vm63, %v245, 0
    %253 = vmatpush.msra.mxu0 0.0
    %254 = vmatpush.msra.mxu0 0.0
    %255 = vmatpush.msra.mxu0 0.0
    %256 = vmatpush.msra.mxu0 0.0
    %257 = vmatpush.msra.mxu0 0.0
    %258 = vmatpush.msra.mxu0 0.0
    %259 = vmatpush.msra.mxu0 0.0
    %260 = vmatpush.msra.mxu0 0.0
    %261 = vmatpush.msra.mxu0 0.0
    %262 = vmatpush.msra.mxu0 0.0
    %263 = vmatpush.msra.mxu0 0.0
    %264 = vmatpush.msra.mxu0 0.0
    %265 = vmatpush.msra.mxu0 %v60
    %266 = vmatpush.msra.mxu0 %v59
    %267 = vmatpush.msra.mxu0 %v58
    %268 = vmatpush.msra.mxu0 %v57
    %269 = vmatmul.f32.gmra.mxu0 %v251
    %v270 = vpop.f32.mrf.mxu0
    %v271 = vadd.f32 %v249, %v270
    %272 = vdwg.mxu0
    %v273 = vmul.f32 %v245, 0.5
    %v274 = vtanh.pop %v271
    %v275 = vmul.f32 %v274, 0.5
    %v276 = vadd.f32 %v273, %v275
    %s277 = scalar_lea.vmem [#allocation8], 12
    %278 = vst.msk [vmem:[%s277] sm:$0x3] %vm91, %v276
    %s279 = scalar_lea.vmem [#allocation3], 14
    %v280 = vld [vmem:[%s279] sm:$0x3]
    %v282 = vsel %vm63, %v276, 0
    %284 = vmatpush.msra.mxu0 0.0
    %285 = vmatpush.msra.mxu0 0.0
    %286 = vmatpush.msra.mxu0 0.0
    %287 = vmatpush.msra.mxu0 0.0
    %288 = vmatpush.msra.mxu0 0.0
    %289 = vmatpush.msra.mxu0 0.0
    %290 = vmatpush.msra.mxu0 0.0
    %291 = vmatpush.msra.mxu0 0.0
    %292 = vmatpush.msra.mxu0 0.0
    %293 = vmatpush.msra.mxu0 0.0
    %294 = vmatpush.msra.mxu0 0.0
    %295 = vmatpush.msra.mxu0 0.0
    %296 = vmatpush.msra.mxu0 %v60
    %297 = vmatpush.msra.mxu0 %v59
    %298 = vmatpush.msra.mxu0 %v58
    %299 = vmatpush.msra.mxu0 %v57
    %300 = vmatmul.f32.gmra.mxu0 %v282
    %v301 = vpop.f32.mrf.mxu0
    %v302 = vadd.f32 %v280, %v301
    %303 = vdwg.mxu0
    %v304 = vmul.f32 %v276, 0.5
    %v305 = vtanh.pop %v302
    %v306 = vmul.f32 %v305, 0.5
    %v307 = vadd.f32 %v304, %v306
    %s308 = scalar_lea.vmem [#allocation8], 14
    %309 = vst.msk [vmem:[%s308] sm:$0x3] %vm91, %v307
    %310 = vst.msk [vmem:[#allocation2] sm:$0x3] %vm91, %v307
    // Predicated region
    $region26: #{tpu_custom_call.1} parent=1 // pred_check
      _
    $region27: #{tpu_custom_call.1} parent=1 // pred_check_branch
      %312 = sbr.rel (0) target = $region29
    $region28: #{tpu_custom_call.1} parent=1 // pred_region
      %314 = vsyncadd [#allocation5], 0
      %s315 = sshll.u32 [#allocation8], 4
      %s316 = int_to_ptr.vmem [resolvable:$true] %s315
      %s317 = sshll.u32 %s3, 4
      %s318 = int_to_ptr.hbm [resolvable:$true] %s317
      %323 = dma.vmem_to_hbm [thread:$0]  %s316, 256, %s318, [#allocation5], 32, 32, 2
    $region29: #{tpu_custom_call.1} parent=1 // pred_fallthru
      _
    // Predicated region
    $region30: #{tpu_custom_call.1} parent=1 // pred_check
      _
    $region31: #{tpu_custom_call.1} parent=1 // pred_check_branch
      %325 = sbr.rel (0) target = $region33
    $region32: #{tpu_custom_call.1} parent=1 // pred_region
      %327 = dma.done [#allocation5], 256
    $region33: #{tpu_custom_call.1} parent=1 // pred_fallthru
      _
    %328 = vsyncpa [#allocation4], 1
    %329 = vsyncpa [#allocation7], 1
    %330 = vsyncpa [#allocation5], 1

</llo_original>
